<compile_context>
chip_gen: v5e
topology: v5e:2x2
jax: 0.10.0
libtpu: 0.0.40
codegen_flags: <defaults>
</compile_context>

<pallas_src>
import functools
import math

import jax
import jax.numpy as jnp
from jax import lax
from jax.experimental import pallas as pl
from jax.experimental.pallas import tpu as pltpu


def _smooth_l1_kernel(pred_ref, targ_ref, w_ref, out_ref, *, sigma, code_size,
                      pack):
    """Smooth-L1 on a lane-dense (TR, pack*code_size) block.

    pred/targ/out blocks: (TR, L), L = pack*code_size (multiple of 128).
    w block:              (TR, pack); weight j applies to lanes
                          [j*code_size, (j+1)*code_size).
    """
    x = pred_ref[...].astype(jnp.float32)
    t = targ_ref[...].astype(jnp.float32)
    diff = x - t
    abs_diff = jnp.abs(diff)
    thresh = 1.0 / (sigma * sigma)
    loss = jnp.where(abs_diff <= thresh,
                     0.5 * jnp.square(sigma * abs_diff),
                     abs_diff - 0.5 * thresh)

    # Expand weights 1 -> code_size along lanes via an MXU matmul with a
    # statically built expansion matrix E[j, k] = (k // code_size == j).
    L = pack * code_size
    j_idx = lax.broadcasted_iota(jnp.int32, (pack, L), 0)
    k_idx = lax.broadcasted_iota(jnp.int32, (pack, L), 1)
    d = k_idx - j_idx * code_size
    expand = jnp.where(jnp.logical_and(d >= 0, d < code_size),
                       jnp.float32(1.0), jnp.float32(0.0))
    w_exp = jnp.dot(w_ref[...].astype(jnp.float32), expand,
                    preferred_element_type=jnp.float32)

    out_ref[...] = (loss * w_exp).astype(out_ref.dtype)


def weighted_smooth_l1_loss(prediction, target, weights=None, *, sigma=3.0,
                            target_block_bytes=1 << 20):
    """JAX/Pallas equivalent of WeightedSmoothL1Loss(sigma, codewise=True).

    prediction, target: [B, N, C] float arrays
    weights:            [B, N] float array or None
    returns:            [B, N, C] float array
    """
    B, N, C = prediction.shape
    assert target.shape == (B, N, C)
    dtype = prediction.dtype
    if weights is None:
        weights = jnp.ones((B, N), dtype=dtype)
    weights = weights.astype(dtype)

    R = B * N
    # Smallest anchor-pack so that pack*C is a multiple of 128 lanes.
    pack = 128 // math.gcd(C, 128)
    L = pack * C

    pred2 = prediction.reshape(R, C)
    targ2 = target.reshape(R, C)
    w1 = weights.reshape(R)

    # Pad the anchor count so it packs evenly (padded rows have weight 0 and
    # are sliced off afterwards).
    R_pad = ((R + pack - 1) // pack) * pack
    if R_pad != R:
        pad = R_pad - R
        pred2 = jnp.pad(pred2, ((0, pad), (0, 0)))
        targ2 = jnp.pad(targ2, ((0, pad), (0, 0)))
        w1 = jnp.pad(w1, (0, pad))
    RP = R_pad // pack

    pred_p = pred2.reshape(RP, L)   # contiguous reshape: free
    targ_p = targ2.reshape(RP, L)
    w_p = w1.reshape(RP, pack)

    # Row tile sized for ~target_block_bytes per f32 data block; multiple of
    # 16 (covers bf16's (16,128) min tile too), or the full row extent.
    tr_cap = max(16, ((target_block_bytes // (L * 4)) // 16) * 16)
    tr = RP if RP <= tr_cap else tr_cap
    grid = (pl.cdiv(RP, tr),)

    data_spec = pl.BlockSpec((tr, L), lambda i: (i, 0))
    w_spec = pl.BlockSpec((tr, pack), lambda i: (i, 0))

    kernel = functools.partial(_smooth_l1_kernel, sigma=float(sigma),
                               code_size=C, pack=pack)

    out_p = pl.pallas_call(
        kernel,
        out_shape=jax.ShapeDtypeStruct((RP, L), dtype),
        grid=grid,
        in_specs=[data_spec, data_spec, w_spec],
        out_specs=data_spec,
        compiler_params=pltpu.CompilerParams(
            dimension_semantics=("parallel",),
            vmem_limit_bytes=32 * 1024 * 1024),
    )(pred_p, targ_p, w_p)

    return out_p.reshape(R_pad, C)[:R].reshape(B, N, C)


def _reference(prediction, target, weights, sigma=3.0):
    # Pure-JAX reference mirroring the PyTorch forward (codewise=True).
    diff = prediction - target
    abs_diff = jnp.abs(diff)
    lt = (abs_diff <= 1.0 / sigma ** 2).astype(abs_diff.dtype)
    loss = lt * 0.5 * jnp.square(abs_diff * sigma) + \
        (abs_diff - 0.5 / sigma ** 2) * (1.0 - lt)
    if weights is not None:
        loss = loss * weights[..., None]
    return loss


if __name__ == "__main__":
    key = jax.random.PRNGKey(0)
    k1, k2, k3 = jax.random.split(key, 3)

    B, N, C = 2, 64, 8  # batch, num_anchors, code_size
    pred = jax.random.normal(k1, (B, N, C), dtype=jnp.float32)
    targ = jax.random.normal(k2, (B, N, C), dtype=jnp.float32)
    wts = jax.random.uniform(k3, (B, N), dtype=jnp.float32)

    out = weighted_smooth_l1_loss(pred, targ, wts, sigma=3.0)
    out = jax.block_until_ready(out)
    ref = _reference(pred, targ, wts, sigma=3.0)
    assert out.shape == (B, N, C)
    assert jnp.allclose(out, ref, atol=1e-5, rtol=1e-5), "mismatch vs reference"

    out_nw = weighted_smooth_l1_loss(pred, targ, None, sigma=3.0)
    out_nw = jax.block_until_ready(out_nw)
    ref_nw = _reference(pred, targ, None, sigma=3.0)
    assert jnp.allclose(out_nw, ref_nw, atol=1e-5, rtol=1e-5), "mismatch (no weights)"

    print("KERNEL_OK")
</pallas_src>

<mosaic_0001>
module attributes {stable_mosaic.version = 11 : i64} {
  func.func @_smooth_l1_kernel(%arg0: i32, %arg1: memref<8x128xf32, #tpu.memory_space<vmem>>, %arg2: memref<8x128xf32, #tpu.memory_space<vmem>>, %arg3: memref<8x16xf32, #tpu.memory_space<vmem>>, %arg4: memref<8x128xf32, #tpu.memory_space<vmem>>) attributes {dimension_semantics = [#tpu.dimension_semantics<parallel>], iteration_bounds = array<i64: 1>, scalar_prefetch = 0 : i64, scratch_operands = 0 : i64, tpu.core_type = #tpu.core_type<tc>, window_params = [{transform_indices = @transform_0, window_bounds = array<i64: 8, 128>}, {transform_indices = @transform_1, window_bounds = array<i64: 8, 128>}, {transform_indices = @transform_2, window_bounds = array<i64: 8, 16>}, {transform_indices = @transform_3, window_bounds = array<i64: 8, 128>}]} {
    %c0 = arith.constant 0 : index
    %c0_0 = arith.constant 0 : index
    %0 = vector.load %arg1[%c0, %c0_0] : memref<8x128xf32, #tpu.memory_space<vmem>>, vector<8x128xf32>
    %c0_1 = arith.constant 0 : index
    %c0_2 = arith.constant 0 : index
    %1 = vector.load %arg2[%c0_1, %c0_2] : memref<8x128xf32, #tpu.memory_space<vmem>>, vector<8x128xf32>
    %2 = arith.subf %0, %1 : vector<8x128xf32>
    %3 = math.absf %2 : vector<8x128xf32>
    %cst = arith.constant 0.111111112 : f32
    %4 = vector.broadcast %cst : f32 to vector<8x128xf32>
    %5 = arith.cmpf ole, %3, %4 : vector<8x128xf32>
    %cst_3 = arith.constant 3.000000e+00 : f32
    %6 = vector.broadcast %cst_3 : f32 to vector<8x128xf32>
    %7 = arith.mulf %6, %3 : vector<8x128xf32>
    %8 = arith.mulf %7, %7 : vector<8x128xf32>
    %cst_4 = arith.constant 5.000000e-01 : f32
    %9 = vector.broadcast %cst_4 : f32 to vector<8x128xf32>
    %10 = arith.mulf %9, %8 : vector<8x128xf32>
    %cst_5 = arith.constant 0.055555556 : f32
    %11 = vector.broadcast %cst_5 : f32 to vector<8x128xf32>
    %12 = arith.subf %3, %11 : vector<8x128xf32>
    %13 = arith.select %5, %10, %12 : vector<8x128xi1>, vector<8x128xf32>
    %14 = tpu.iota {dimensions = array<i32: 0>} : vector<16x128xi32>
    %15 = tpu.iota {dimensions = array<i32: 1>} : vector<16x128xi32>
    %c8_i32 = arith.constant 8 : i32
    %16 = vector.broadcast %c8_i32 : i32 to vector<16x128xi32>
    %17 = arith.muli %14, %16 : vector<16x128xi32>
    %18 = arith.subi %15, %17 : vector<16x128xi32>
    %c0_i32 = arith.constant 0 : i32
    %19 = vector.broadcast %c0_i32 : i32 to vector<16x128xi32>
    %20 = arith.cmpi sge, %18, %19 : vector<16x128xi32>
    %c8_i32_6 = arith.constant 8 : i32
    %21 = vector.broadcast %c8_i32_6 : i32 to vector<16x128xi32>
    %22 = arith.cmpi slt, %18, %21 : vector<16x128xi32>
    %23 = arith.andi %20, %22 : vector<16x128xi1>
    %cst_7 = arith.constant 1.000000e+00 : f32
    %cst_8 = arith.constant 0.000000e+00 : f32
    %24 = vector.broadcast %cst_7 : f32 to vector<16x128xf32>
    %25 = vector.broadcast %cst_8 : f32 to vector<16x128xf32>
    %26 = arith.select %23, %24, %25 : vector<16x128xi1>, vector<16x128xf32>
    %c0_9 = arith.constant 0 : index
    %c0_10 = arith.constant 0 : index
    %27 = vector.load %arg3[%c0_9, %c0_10] : memref<8x16xf32, #tpu.memory_space<vmem>>, vector<8x16xf32>
    %cst_11 = arith.constant dense<0.000000e+00> : vector<8x128xf32>
    %28 = tpu.matmul %27, %26, %cst_11 {dimension_numbers = #tpu.dot_dimension_numbers<[1], [0], [0], [1], [0, 0, 1, 1], [], []>} : vector<8x16xf32>, vector<16x128xf32>, vector<8x128xf32> -> vector<8x128xf32>
    %29 = arith.mulf %13, %28 : vector<8x128xf32>
    %c0_12 = arith.constant 0 : index
    %c0_13 = arith.constant 0 : index
    %30 = vector.load %arg4[%c0_12, %c0_13] : memref<8x128xf32, #tpu.memory_space<vmem>>, vector<8x128xf32>
    tpu.vector_store %arg4[%c0_12, %c0_13], %29 {strides = array<i32>} : memref<8x128xf32, #tpu.memory_space<vmem>>, vector<8x128xf32>,
    return
  }
  func.func @transform_0(%arg0: i32) -> (i32, i32) {
    %c0_i32 = arith.constant 0 : i32
    %c0_i32_0 = arith.constant 0 : i32
    return %arg0, %c0_i32 : i32, i32
  }
  func.func @transform_1(%arg0: i32) -> (i32, i32) {
    %c0_i32 = arith.constant 0 : i32
    %c0_i32_0 = arith.constant 0 : i32
    return %arg0, %c0_i32 : i32, i32
  }
  func.func @transform_2(%arg0: i32) -> (i32, i32) {
    %c0_i32 = arith.constant 0 : i32
    %c0_i32_0 = arith.constant 0 : i32
    return %arg0, %c0_i32 : i32, i32
  }
  func.func @transform_3(%arg0: i32) -> (i32, i32) {
    %c0_i32 = arith.constant 0 : i32
    %c0_i32_0 = arith.constant 0 : i32
    return %arg0, %c0_i32 : i32, i32
  }
}

</mosaic_0001>

<llo_original>
// kernel: tpu_custom_call.1
$region0: #{tpu_custom_call.1}
  #allocation0 [shape = 'u32[]', space=smem, size = 0x4, offset = 0x4, fixed_abs, tag = 'smem constant byte address 0x4 - core index']
  #allocation1 [shape = 'u32[72,128]{1,0:T(1,128)}', space=vmem, size = 0x9000, scoped, tag = 'internal scratch']
  %s0 = inlined_call_operand.hbm [shape: f32[8,128], index: 0, kind: input, shape index: {}]
  %s1 = inlined_call_operand.hbm [shape: f32[8,128], index: 1, kind: input, shape index: {}]
  %s2 = inlined_call_operand.hbm [shape: f32[8,16], index: 2, kind: input, shape index: {}]
  %s3 = inlined_call_operand.hbm [shape: f32[8,128], index: 3, kind: output, shape index: {}]
  %s4 = sld [smem:[#allocation0]]
  $region34: #{tpu_custom_call.1} parent=0
    _
  %s6 = ssub.s32 1, %s4
  %s7 = scalar_select 0, %s6, %s4
  $region1: #{tpu_custom_call.1} parent=0
    #allocation2 [shape = 'u8[4096]{0}', space=vmem, size = 0x1000, scoped, tag = 'input window, operand 0, single buffered']
    #allocation3 [shape = 's32[1]{0}', space=sflag, size = 0x4, scoped, tag = 'scoped memory for tpu_custom_call.1']
    #allocation4 [shape = 's32[1]{0}', space=sflag, size = 0x4, scoped, tag = 'scoped memory for tpu_custom_call.1']
    #allocation5 [shape = 'u8[4096]{0}', space=vmem, size = 0x1000, scoped, tag = 'input window, operand 1, single buffered']
    #allocation6 [shape = 's32[1]{0}', space=sflag, size = 0x4, scoped, tag = 'scoped memory for tpu_custom_call.1']
    #allocation7 [shape = 'u8[4096]{0}', space=vmem, size = 0x1000, scoped, tag = 'input window, operand 2, single buffered']
    #allocation8 [shape = 'u8[4096]{0}', space=vmem, size = 0x1000, scoped, tag = 'output window, operand 0, single buffered']
    %8 = vsyncpa [#allocation3], 0
    %9 = vsyncpa [#allocation6], 0
    %10 = vsyncpa [#allocation4], 0
    // Predicated region
    $region2: #{tpu_custom_call.1} parent=1 // pred_check
      _
    $region3: #{tpu_custom_call.1} parent=1 // pred_check_branch
      %12 = sbr.rel (0) target = $region5
    $region4: #{tpu_custom_call.1} parent=1 // pred_region
      %14 = vsyncadd [#allocation3], 0
      %s16 = sshll.u32 %s0, 4
      %s17 = int_to_ptr.hbm [resolvable:$true] %s16
      %s18 = sshll.u32 [#allocation2], 4
      %s19 = int_to_ptr.vmem [resolvable:$true] %s18
      %21 = dma.hbm_to_vmem [thread:$0]  %s17, 128, %s19, [#allocation3]
    $region5: #{tpu_custom_call.1} parent=1 // pred_fallthru
      _
    // Predicated region
    $region6: #{tpu_custom_call.1} parent=1 // pred_check
      _
    $region7: #{tpu_custom_call.1} parent=1 // pred_check_branch
      %23 = sbr.rel (0) target = $region9
    $region8: #{tpu_custom_call.1} parent=1 // pred_region
      %25 = vsyncadd [#allocation6], 0
      %s27 = sshll.u32 %s1, 4
      %s28 = int_to_ptr.hbm [resolvable:$true] %s27
      %s29 = sshll.u32 [#allocation5], 4
      %s30 = int_to_ptr.vmem [resolvable:$true] %s29
      %32 = dma.hbm_to_vmem [thread:$0]  %s28, 128, %s30, [#allocation6]
    $region9: #{tpu_custom_call.1} parent=1 // pred_fallthru
      _
    // Predicated region
    $region10: #{tpu_custom_call.1} parent=1 // pred_check
      _
    $region11: #{tpu_custom_call.1} parent=1 // pred_check_branch
      %34 = sbr.rel (0) target = $region13
    $region12: #{tpu_custom_call.1} parent=1 // pred_region
      %36 = vsyncadd [#allocation6], 0
      %s38 = sshll.u32 %s2, 4
      %s39 = int_to_ptr.hbm [resolvable:$true] %s38
      %s40 = sshll.u32 [#allocation7], 4
      %s41 = int_to_ptr.vmem [resolvable:$true] %s40
      %43 = dma.hbm_to_vmem [thread:$0]  %s39, 128, %s41, [#allocation6]
    $region13: #{tpu_custom_call.1} parent=1 // pred_fallthru
      _
    // Predicated region
    $region14: #{tpu_custom_call.1} parent=1 // pred_check
      _
    $region15: #{tpu_custom_call.1} parent=1 // pred_check_branch
      %45 = sbr.rel (0) target = $region17
    $region16: #{tpu_custom_call.1} parent=1 // pred_region
      %47 = dma.done [#allocation3], 128
    $region17: #{tpu_custom_call.1} parent=1 // pred_fallthru
      _
    // Predicated region
    $region18: #{tpu_custom_call.1} parent=1 // pred_check
      _
    $region19: #{tpu_custom_call.1} parent=1 // pred_check_branch
      %49 = sbr.rel (0) target = $region21
    $region20: #{tpu_custom_call.1} parent=1 // pred_region
      %51 = dma.done [#allocation6], 128
    $region21: #{tpu_custom_call.1} parent=1 // pred_fallthru
      _
    // Predicated region
    $region22: #{tpu_custom_call.1} parent=1 // pred_check
      _
    $region23: #{tpu_custom_call.1} parent=1 // pred_check_branch
      %53 = sbr.rel (0) target = $region25
    $region24: #{tpu_custom_call.1} parent=1 // pred_region
      %55 = dma.done [#allocation6], 128
    $region25: #{tpu_custom_call.1} parent=1 // pred_fallthru
      _
    %v56 = vld [vmem:[#allocation2] sm:$0xff]
    %v57 = vld [vmem:[#allocation5] sm:$0xff]
    %v58 = vsub.f32 %v56, %v57
    %v59 = vand.u32 2147483647, %v58
    %vm60 = vcmp.le.f32.partialorder %v59, 0.11111111
    %v61 = vmul.f32 %v59, 3.0
    %v62 = vmul.f32 %v61, %v61
    %v63 = vmul.f32 %v62, 0.5
    %v64 = vsub.f32 %v59, 0.055555556
    %v65 = vsel %vm60, %v63, %v64
    %v66 = vlaneseq
    %v67 = vshrl.u32 %v66, 7
    %v68 = vadd.s32 %v67, 8
    %v69 = vlaneseq
    %v70 = vand.u32 %v69, 127
    %v71 = vmul.u32 %v67, 8
    %v72 = vmul.u32 %v68, 8
    %v73 = vsub.s32 %v70, %v71
    %v74 = vsub.s32 %v70, %v72
    %vm75 = vcmp.ge.s32.totalorder %v73, 0
    %vm76 = vcmp.ge.s32.totalorder %v74, 0
    %vm77 = vcmp.lt.s32.totalorder %v73, 8
    %vm78 = vcmp.lt.s32.totalorder %v74, 8
    %vm79 = vmand %vm75, %vm77
    %vm80 = vmand %vm76, %vm78
    %v81 = vsel %vm79, 1.0, 0.0
    %v82 = vsel %vm80, 1.0, 0.0
    %v83 = vld [vmem:[#allocation7] sm:$0xff]
    %vm84 = vcmask 130048
    %v86 = vsel %vm84, %v83, 0
    %88 = vmatpush.msra.mxu0 0.0
    %89 = vmatpush.msra.mxu0 0.0
    %90 = vmatpush.msra.mxu0 0.0
    %91 = vmatpush.msra.mxu0 0.0
    %92 = vmatpush.msra.mxu0 0.0
    %93 = vmatpush.msra.mxu0 0.0
    %94 = vmatpush.msra.mxu0 0.0
    %95 = vmatpush.msra.mxu0 0.0
    %96 = vmatpush.msra.mxu0 0.0
    %97 = vmatpush.msra.mxu0 0.0
    %98 = vmatpush.msra.mxu0 0.0
    %99 = vmatpush.msra.mxu0 0.0
    %100 = vmatpush.msra.mxu0 0.0
    %101 = vmatpush.msra.mxu0 0.0
    %102 = vmatpush.msra.mxu0 %v82
    %103 = vmatpush.msra.mxu0 %v81
    %104 = vmatmul.f32.gmra.mxu0 %v86
    %v105 = vpop.f32.mrf.mxu0
    %v106 = vadd.f32 0.0, %v105
    %107 = vdwg.mxu0
    %v108 = vmul.f32 %v65, %v106
    %109 = vst [vmem:[#allocation8] sm:$0xff] %v108
    // Predicated region
    $region26: #{tpu_custom_call.1} parent=1 // pred_check
      _
    $region27: #{tpu_custom_call.1} parent=1 // pred_check_branch
      %111 = sbr.rel (0) target = $region29
    $region28: #{tpu_custom_call.1} parent=1 // pred_region
      %113 = vsyncadd [#allocation4], 0
      %s115 = sshll.u32 [#allocation8], 4
      %s116 = int_to_ptr.vmem [resolvable:$true] %s115
      %s117 = sshll.u32 %s3, 4
      %s118 = int_to_ptr.hbm [resolvable:$true] %s117
      %120 = dma.vmem_to_hbm [thread:$0]  %s116, 128, %s118, [#allocation4]
    $region29: #{tpu_custom_call.1} parent=1 // pred_fallthru
      _
    // Predicated region
    $region30: #{tpu_custom_call.1} parent=1 // pred_check
      _
    $region31: #{tpu_custom_call.1} parent=1 // pred_check_branch
      %122 = sbr.rel (0) target = $region33
    $region32: #{tpu_custom_call.1} parent=1 // pred_region
      %124 = dma.done [#allocation4], 128
    $region33: #{tpu_custom_call.1} parent=1 // pred_fallthru
      _
    %125 = vsyncpa [#allocation3], 1
    %126 = vsyncpa [#allocation6], 1
    %127 = vsyncpa [#allocation4], 1

</llo_original>
